<compile_context>
chip_gen: v5e
topology: v5e:2x2
jax: 0.10.0
libtpu: 0.0.40
codegen_flags: <defaults>
</compile_context>

<pallas_src>
import functools

import jax
import jax.numpy as jnp
from jax import lax
from jax.experimental import pallas as pl
from jax.experimental.pallas import tpu as pltpu


def _grad_loss_kernel(x_ref, o_ref, acch_ref, accw_ref, prev_ref, wrap_ref, *,
                      penalty, diff_dtype, block_h, h_total, tiles_per_split,
                      use_roll, ragged):
    c = pl.program_id(0)          # split of the H range ("parallel" axis)
    i = pl.program_id(1)          # tile within the split ("arbitrary" axis)
    x = x_ref[...].astype(diff_dtype)          # (block_h, W)
    th, w = x.shape

    @pl.when(i == 0)
    def _init():
        acch_ref[...] = jnp.zeros_like(acch_ref)
        accw_ref[...] = jnp.zeros_like(accw_ref)
        wrap_ref[...] = jnp.zeros_like(wrap_ref)
        # Seed the carry with this tile's own first row so the boundary row
        # difference of the split's first tile is exactly zero (no mask needed).
        prev_ref[...] = x[0:1, :]

    def f32_penalty(d):
        # Diffs / abs stay in diff_dtype (bf16 on v6e/v7x); upcast at square / sum.
        if penalty == "l2":
            d32 = d.astype(jnp.float32)
            return d32 * d32
        return jnp.abs(d).astype(jnp.float32)

    # --- dH: row differences --------------------------------------------------
    dh_in = f32_penalty(x[1:, :] - x[:-1, :])          # (block_h-1, W)
    dh_b = f32_penalty(x[0:1, :] - prev_ref[...])      # (1, W) cross-tile boundary

    # --- dW: column differences -------------------------------------------------
    if use_roll:
        # Lane-aligned: roll by 1 along lanes (XLU slot) and difference.  Summed over
        # all W columns this equals all adjacent-column diffs plus exactly one wrap
        # term f(x[:, 0] - x[:, W-1]) per row (true for either rotation direction),
        # which is accumulated separately and subtracted at finalize.
        dw = f32_penalty(pltpu.roll(x, 1, axis=1) - x)          # (block_h, W)
        wrap = f32_penalty(x[:, 0:1] - x[:, w - 1:w])           # (block_h, 1)
    else:
        dw = f32_penalty(x[:, 1:] - x[:, :-1])                  # (block_h, W-1)
        wrap = None

    if ragged:
        # Only traced when H % block_h != 0: mask the padded tail rows of the global
        # last tile.  jnp.where (not multiply) so unspecified pad values are killed.
        g = c * tiles_per_split + i
        rows_valid = jnp.minimum(h_total - g * block_h, block_h)
        row_ids = lax.broadcasted_iota(jnp.int32, (block_h, 1), 0)
        dh_in = jnp.where(row_ids[:block_h - 1] + 1 < rows_valid, dh_in, 0.0)
        dw = jnp.where(row_ids < rows_valid, dw, 0.0)
        if wrap is not None:
            wrap = jnp.where(row_ids < rows_valid, wrap, 0.0)

    # Lane-dense partial sums: fold only the sublane (row) axis per tile; the single
    # cross-lane reduce happens once per split, at the last grid step.
    acch_ref[...] += jnp.sum(dh_in, axis=0, keepdims=True) + dh_b
    accw_ref[...] += jnp.sum(dw, axis=0, keepdims=True)
    if wrap is not None:
        wrap_ref[...] += jnp.sum(wrap, axis=0, keepdims=True)

    # Carry this tile's last row for the next sequential grid step of this split.
    prev_ref[...] = x[th - 1:th, :]

    @pl.when(i == pl.num_programs(1) - 1)
    def _fin():
        total = jnp.sum(acch_ref[...]) + jnp.sum(accw_ref[...])
        if use_roll:
            total = total - wrap_ref[0, 0]
        o_ref[0, 0] = total


def _vmem_budget_bytes() -> int:
    """Generation-aware scoped-VMEM budget: ~half of physical VMEM, capped at 64 MiB
    (=> 64 MiB on v5e/v6e with 128 MiB physical, 32 MiB on v7x with 64 MiB per TC)."""
    cap = 128 * 1024 * 1024
    try:
        cap = int(pltpu.get_tpu_info().vmem_capacity_bytes)
    except Exception:
        pass
    return max(16 * 1024 * 1024, min(64 * 1024 * 1024, cap // 2))


def _has_bf16_vpu() -> bool:
    """bf16 VALU exists from v6e onward; keep the f32 path on older chips."""
    try:
        kind = jax.devices()[0].device_kind.lower()
    except Exception:
        return False
    return not any(tag in kind for tag in ("v2", "v3", "v4", "v5"))


def _pick_block_h(H: int, W: int, itemsize: int, vmem_budget: int) -> int:
    """Largest block height (multiple of 8) with block bytes ~= vmem_budget / 10,
    leaving room for 2 double-buffered source blocks + ~3 block-sized f32 temps."""
    target_bytes = max(1 << 20, vmem_budget // 10)
    rows = target_bytes // max(1, W * itemsize)
    block_h = max(8, (rows // 8) * 8)
    if block_h >= H:
        return H
    # Prefer exact divisors of H (no ragged tail); among those, prefer an even tile
    # count so the work splits cleanly across the two TensorCores of a v7x chip.
    for th in range(block_h, 7, -8):
        if H % th == 0 and (H // th) % 2 == 0:
            return th
    for th in range(block_h, 7, -8):
        if H % th == 0:
            return th
    return block_h      # ragged tail is masked in-kernel


def gradient_loss_2d(x: jax.Array, penalty: str = "l1", block_h=None,
                     num_splits=None, diff_dtype=None) -> jax.Array:
    """Pallas implementation of gradientLoss2d.forward for a 2D [H, W] input."""
    assert x.ndim == 2, "gradientLoss2d kernel expects a 2D [H, W] input"
    H, W = x.shape
    assert H >= 2 and W >= 2, "gradientLoss2d needs H >= 2 and W >= 2"
    # TODO(synk): add a W (lane) tiling path with a column carry for extremely wide W;
    # blocks currently always span the full width.

    itemsize = jnp.dtype(x.dtype).itemsize
    vmem_budget = _vmem_budget_bytes()

    if diff_dtype is None:
        diff_dtype = (jnp.bfloat16
                      if (x.dtype == jnp.bfloat16 and _has_bf16_vpu())
                      else jnp.float32)
    diff_dtype = jnp.dtype(diff_dtype)

    if block_h is None:
        block_h = _pick_block_h(H, W, itemsize, vmem_budget)
    block_h = int(block_h)
    if block_h >= H:
        block_h = H                                # full-extent block is always legal
    else:
        block_h = max(8, (block_h // 8) * 8)       # sublane dim must be multiple of 8
        if block_h >= H:
            block_h = H

    num_tiles = pl.cdiv(H, block_h)
    ragged = (H % block_h) != 0

    if num_splits is None:
        # Use both TensorCores on v7x whenever the tile count divides evenly; the
        # size-2 "parallel" axis is a harmless no-op on 1-TC chips (v5e/v6e).
        num_splits = 2 if (num_tiles >= 2 and num_tiles % 2 == 0) else 1
    num_splits = int(num_splits)
    if num_splits < 1 or num_tiles % num_splits != 0:
        num_splits = 1
    tiles_per_split = num_tiles // num_splits

    use_roll = (W % 128) == 0
    accw_width = W if use_roll else W - 1

    kernel = functools.partial(
        _grad_loss_kernel, penalty=penalty, diff_dtype=diff_dtype, block_h=block_h,
        h_total=H, tiles_per_split=tiles_per_split, use_roll=use_roll, ragged=ragged)

    partials = pl.pallas_call(
        kernel,
        out_shape=jax.ShapeDtypeStruct((num_splits, 1), jnp.float32),
        grid=(num_splits, tiles_per_split),
        in_specs=[pl.BlockSpec((block_h, W),
                               lambda c, i: (c * tiles_per_split + i, 0))],
        out_specs=pl.BlockSpec((1, 1), lambda c, i: (c, 0),
                               memory_space=pltpu.MemorySpace.SMEM),
        scratch_shapes=[
            pltpu.VMEM((1, W), jnp.float32),            # dH lane-dense accumulator
            pltpu.VMEM((1, accw_width), jnp.float32),   # dW lane-dense accumulator
            pltpu.VMEM((1, W), diff_dtype),             # carry: previous tile's last row
            pltpu.VMEM((1, 1), jnp.float32),            # wrap-column correction (roll)
        ],
        compiler_params=pltpu.CompilerParams(
            dimension_semantics=("parallel", "arbitrary"),
            vmem_limit_bytes=vmem_budget,
        ),
        cost_estimate=pl.CostEstimate(
            flops=4 * H * W, transcendentals=0,
            bytes_accessed=H * W * itemsize + num_splits * 4),
    )(x)

    loss = jnp.sum(partials)
    if num_splits > 1:
        # The kernel zeroes the boundary row-diff at each split's first tile; add the
        # missing inter-split terms |x[b] - x[b-1]| here (num_splits-1 rows of diffs).
        bnds = [s * tiles_per_split * block_h for s in range(1, num_splits)]
        hi = x[jnp.array(bnds), :].astype(jnp.float32)
        lo = x[jnp.array([b - 1 for b in bnds]), :].astype(jnp.float32)
        db = jnp.abs(hi - lo)
        if penalty == "l2":
            db = db * db
        loss = loss + jnp.sum(db)
    return loss


def _reference(x: jax.Array, penalty: str = "l1") -> jax.Array:
    x = x.astype(jnp.float32)
    dH = jnp.abs(x[1:, :] - x[:-1, :])
    dW = jnp.abs(x[:, 1:] - x[:, :-1])
    if penalty == "l2":
        dH = dH * dH
        dW = dW * dW
    return jnp.sum(dH) + jnp.sum(dW)


if __name__ == "__main__":
    key = jax.random.PRNGKey(0)
    H, W = 128, 256
    x = jax.random.normal(key, (H, W), dtype=jnp.float32)
    x_bf16 = x.astype(jnp.bfloat16)

    # (input, penalty, block_h): cover auto tiling, forced multi-tile (carry + 2-way
    # split + inter-split boundary), both penalties, bf16 input, ragged H (masked
    # tail rows), and a non-multiple-of-128 W (slice fallback path).
    cases = [
        (x, "l1", None),
        (x, "l1", 32),
        (x, "l2", 32),
        (x, "l2", 8),
        (x_bf16, "l1", 32),
        (x[:120, :], "l1", 32),
        (x[:, :200], "l1", 32),
    ]
    for inp, penalty, bh in cases:
        out = gradient_loss_2d(inp, penalty=penalty, block_h=bh)
        ref = _reference(inp, penalty)
        out, ref = jax.block_until_ready((out, ref))
        assert jnp.allclose(out, ref, rtol=3e-4, atol=1e-2), (penalty, bh, out, ref)

    print("KERNEL_OK")
</pallas_src>

<mosaic_0001>
module attributes {stable_mosaic.version = 11 : i64} {
  func.func @_grad_loss_kernel(%arg0: i32, %arg1: i32, %arg2: memref<128x256xf32, #tpu.memory_space<vmem>>, %arg3: memref<1x1xf32, #tpu.memory_space<smem>>, %arg4: memref<1x256xf32, #tpu.memory_space<vmem>>, %arg5: memref<1x256xf32, #tpu.memory_space<vmem>>, %arg6: memref<1x256xf32, #tpu.memory_space<vmem>>, %arg7: memref<1x1xf32, #tpu.memory_space<vmem>>) attributes {dimension_semantics = [#tpu.dimension_semantics<parallel>, #tpu.dimension_semantics<arbitrary>], iteration_bounds = array<i64: 1, 1>, scalar_prefetch = 0 : i64, scratch_operands = 4 : i64, tpu.core_type = #tpu.core_type<tc>, window_params = [{transform_indices = @transform_0, window_bounds = array<i64: 128, 256>}, {transform_indices = @transform_1, window_bounds = array<i64: 1, 1>}]} {
    %c0 = arith.constant 0 : index
    %c0_0 = arith.constant 0 : index
    %0 = vector.load %arg2[%c0, %c0_0] : memref<128x256xf32, #tpu.memory_space<vmem>>, vector<128x256xf32>
    %c0_i32 = arith.constant 0 : i32
    %1 = arith.cmpi eq, %arg1, %c0_i32 : i32
    %2 = arith.extui %1 : i1 to i32
    %c0_i32_1 = arith.constant 0 : i32
    %3 = arith.cmpi ne, %2, %c0_i32_1 : i32
    scf.if %3 {
      %cst_22 = arith.constant 0.000000e+00 : f32
      %40 = vector.broadcast %cst_22 : f32 to vector<1x256xf32>
      %c0_23 = arith.constant 0 : index
      %c0_24 = arith.constant 0 : index
      %41 = vector.load %arg4[%c0_23, %c0_24] : memref<1x256xf32, #tpu.memory_space<vmem>>, vector<1x256xf32>
      tpu.vector_store %arg4[%c0_23, %c0_24], %40 {strides = array<i32>} : memref<1x256xf32, #tpu.memory_space<vmem>>, vector<1x256xf32>,
      %cst_25 = arith.constant 0.000000e+00 : f32
      %42 = vector.broadcast %cst_25 : f32 to vector<1x256xf32>
      %c0_26 = arith.constant 0 : index
      %c0_27 = arith.constant 0 : index
      %43 = vector.load %arg5[%c0_26, %c0_27] : memref<1x256xf32, #tpu.memory_space<vmem>>, vector<1x256xf32>
      tpu.vector_store %arg5[%c0_26, %c0_27], %42 {strides = array<i32>} : memref<1x256xf32, #tpu.memory_space<vmem>>, vector<1x256xf32>,
      %cst_28 = arith.constant 0.000000e+00 : f32
      %44 = vector.broadcast %cst_28 : f32 to vector<1x1xf32>
      %c0_29 = arith.constant 0 : index
      %c0_30 = arith.constant 0 : index
      %45 = vector.load %arg7[%c0_29, %c0_30] : memref<1x1xf32, #tpu.memory_space<vmem>>, vector<1x1xf32>
      tpu.vector_store %arg7[%c0_29, %c0_30], %44 {strides = array<i32>} : memref<1x1xf32, #tpu.memory_space<vmem>>, vector<1x1xf32>,
      %46 = vector.extract_strided_slice %0 {offsets = [0, 0], sizes = [1, 256], strides = [1, 1]} : vector<128x256xf32> to vector<1x256xf32>
      %c0_31 = arith.constant 0 : index
      %c0_32 = arith.constant 0 : index
      %47 = vector.load %arg6[%c0_31, %c0_32] : memref<1x256xf32, #tpu.memory_space<vmem>>, vector<1x256xf32>
      tpu.vector_store %arg6[%c0_31, %c0_32], %46 {strides = array<i32>} : memref<1x256xf32, #tpu.memory_space<vmem>>, vector<1x256xf32>,
    } else {
    }
    %4 = vector.extract_strided_slice %0 {offsets = [1, 0], sizes = [127, 256], strides = [1, 1]} : vector<128x256xf32> to vector<127x256xf32>
    %5 = vector.extract_strided_slice %0 {offsets = [0, 0], sizes = [127, 256], strides = [1, 1]} : vector<128x256xf32> to vector<127x256xf32>
    %6 = arith.subf %4, %5 : vector<127x256xf32>
    %7 = math.absf %6 : vector<127x256xf32>
    %8 = vector.extract_strided_slice %0 {offsets = [0, 0], sizes = [1, 256], strides = [1, 1]} : vector<128x256xf32> to vector<1x256xf32>
    %c0_2 = arith.constant 0 : index
    %c0_3 = arith.constant 0 : index
    %9 = vector.load %arg6[%c0_2, %c0_3] : memref<1x256xf32, #tpu.memory_space<vmem>>, vector<1x256xf32>
    %10 = arith.subf %8, %9 : vector<1x256xf32>
    %11 = math.absf %10 : vector<1x256xf32>
    %c1_i32 = arith.constant 1 : i32
    %12 = tpu.dynamic_rotate %0 by %c1_i32 dim 1 : vector<128x256xf32>, i32 -> vector<128x256xf32>
    %13 = arith.subf %12, %0 : vector<128x256xf32>
    %14 = math.absf %13 : vector<128x256xf32>
    %15 = vector.extract_strided_slice %0 {offsets = [0, 0], sizes = [128, 1], strides = [1, 1]} : vector<128x256xf32> to vector<128x1xf32>
    %16 = vector.extract_strided_slice %0 {offsets = [0, 255], sizes = [128, 1], strides = [1, 1]} : vector<128x256xf32> to vector<128x1xf32>
    %17 = arith.subf %15, %16 : vector<128x1xf32>
    %18 = math.absf %17 : vector<128x1xf32>
    %c0_4 = arith.constant 0 : index
    %c0_5 = arith.constant 0 : index
    %19 = vector.load %arg4[%c0_4, %c0_5] : memref<1x256xf32, #tpu.memory_space<vmem>>, vector<1x256xf32>
    %cst = arith.constant dense<0.000000e+00> : vector<256xf32>
    %20 = vector.multi_reduction <add>, %7, %cst [0] : vector<127x256xf32> to vector<256xf32>
    %21 = vector.shape_cast %20 : vector<256xf32> to vector<1x256xf32>
    %22 = arith.addf %21, %11 : vector<1x256xf32>
    %23 = arith.addf %19, %22 : vector<1x256xf32>
    %c0_6 = arith.constant 0 : index
    %c0_7 = arith.constant 0 : index
    %24 = vector.load %arg4[%c0_6, %c0_7] : memref<1x256xf32, #tpu.memory_space<vmem>>, vector<1x256xf32>
    tpu.vector_store %arg4[%c0_6, %c0_7], %23 {strides = array<i32>} : memref<1x256xf32, #tpu.memory_space<vmem>>, vector<1x256xf32>,
    %c0_8 = arith.constant 0 : index
    %c0_9 = arith.constant 0 : index
    %25 = vector.load %arg5[%c0_8, %c0_9] : memref<1x256xf32, #tpu.memory_space<vmem>>, vector<1x256xf32>
    %cst_10 = arith.constant dense<0.000000e+00> : vector<256xf32>
    %26 = vector.multi_reduction <add>, %14, %cst_10 [0] : vector<128x256xf32> to vector<256xf32>
    %27 = vector.shape_cast %26 : vector<256xf32> to vector<1x256xf32>
    %28 = arith.addf %25, %27 : vector<1x256xf32>
    %c0_11 = arith.constant 0 : index
    %c0_12 = arith.constant 0 : index
    %29 = vector.load %arg5[%c0_11, %c0_12] : memref<1x256xf32, #tpu.memory_space<vmem>>, vector<1x256xf32>
    tpu.vector_store %arg5[%c0_11, %c0_12], %28 {strides = array<i32>} : memref<1x256xf32, #tpu.memory_space<vmem>>, vector<1x256xf32>,
    %c0_13 = arith.constant 0 : index
    %c0_14 = arith.constant 0 : index
    %30 = vector.load %arg7[%c0_13, %c0_14] : memref<1x1xf32, #tpu.memory_space<vmem>>, vector<1x1xf32>
    %cst_15 = arith.constant dense<0.000000e+00> : vector<1xf32>
    %31 = vector.multi_reduction <add>, %18, %cst_15 [0] : vector<128x1xf32> to vector<1xf32>
    %32 = vector.shape_cast %31 : vector<1xf32> to vector<1x1xf32>
    %33 = arith.addf %30, %32 : vector<1x1xf32>
    %c0_16 = arith.constant 0 : index
    %c0_17 = arith.constant 0 : index
    %34 = vector.load %arg7[%c0_16, %c0_17] : memref<1x1xf32, #tpu.memory_space<vmem>>, vector<1x1xf32>
    tpu.vector_store %arg7[%c0_16, %c0_17], %33 {strides = array<i32>} : memref<1x1xf32, #tpu.memory_space<vmem>>, vector<1x1xf32>,
    %35 = vector.extract_strided_slice %0 {offsets = [127, 0], sizes = [1, 256], strides = [1, 1]} : vector<128x256xf32> to vector<1x256xf32>
    %c0_18 = arith.constant 0 : index
    %c0_19 = arith.constant 0 : index
    %36 = vector.load %arg6[%c0_18, %c0_19] : memref<1x256xf32, #tpu.memory_space<vmem>>, vector<1x256xf32>
    tpu.vector_store %arg6[%c0_18, %c0_19], %35 {strides = array<i32>} : memref<1x256xf32, #tpu.memory_space<vmem>>, vector<1x256xf32>,
    %c0_i32_20 = arith.constant 0 : i32
    %37 = arith.cmpi eq, %arg1, %c0_i32_20 : i32
    %38 = arith.extui %37 : i1 to i32
    %c0_i32_21 = arith.constant 0 : i32
    %39 = arith.cmpi ne, %38, %c0_i32_21 : i32
    scf.if %39 {
      %c0_22 = arith.constant 0 : index
      %c0_23 = arith.constant 0 : index
      %40 = vector.load %arg4[%c0_22, %c0_23] : memref<1x256xf32, #tpu.memory_space<vmem>>, vector<1x256xf32>
      %41 = vector.shape_cast %40 : vector<1x256xf32> to vector<1x1x256xf32>
      %cst_24 = arith.constant dense<0.000000e+00> : vector<1xf32>
      %42 = vector.multi_reduction <add>, %41, %cst_24 [1, 2] : vector<1x1x256xf32> to vector<1xf32>
      %43 = vector.shape_cast %42 : vector<1xf32> to vector<1x1x1xf32>
      %44 = vector.extract %43[0, 0, 0] : f32 from vector<1x1x1xf32>
      %c0_25 = arith.constant 0 : index
      %c0_26 = arith.constant 0 : index
      %45 = vector.load %arg5[%c0_25, %c0_26] : memref<1x256xf32, #tpu.memory_space<vmem>>, vector<1x256xf32>
      %46 = vector.shape_cast %45 : vector<1x256xf32> to vector<1x1x256xf32>
      %cst_27 = arith.constant dense<0.000000e+00> : vector<1xf32>
      %47 = vector.multi_reduction <add>, %46, %cst_27 [1, 2] : vector<1x1x256xf32> to vector<1xf32>
      %48 = vector.shape_cast %47 : vector<1xf32> to vector<1x1x1xf32>
      %49 = vector.extract %48[0, 0, 0] : f32 from vector<1x1x1xf32>
      %50 = arith.addf %44, %49 : f32
      %c0_28 = arith.constant 0 : index
      %c0_29 = arith.constant 0 : index
      %51 = vector.load %arg7[%c0_28, %c0_29] : memref<1x1xf32, #tpu.memory_space<vmem>>, vector<1x1xf32>
      %52 = vector.extract %51[0, 0] : f32 from vector<1x1xf32>
      %53 = arith.subf %50, %52 : f32
      %c0_30 = arith.constant 0 : index
      %c0_31 = arith.constant 0 : index
      %54 = memref.load %arg3[%c0_30, %c0_31] : memref<1x1xf32, #tpu.memory_space<smem>>
      memref.store %53, %arg3[%c0_30, %c0_31] : memref<1x1xf32, #tpu.memory_space<smem>>
    } else {
    }
    return
  }
  func.func @transform_0(%arg0: i32, %arg1: i32) -> (i32, i32) {
    %c1_i32 = arith.constant 1 : i32
    %0 = arith.muli %arg0, %c1_i32 : i32
    %1 = arith.addi %0, %arg1 : i32
    %c0_i32 = arith.constant 0 : i32
    %c0_i32_0 = arith.constant 0 : i32
    return %1, %c0_i32 : i32, i32
  }
  func.func @transform_1(%arg0: i32, %arg1: i32) -> (i32, i32) {
    %c0_i32 = arith.constant 0 : i32
    %c0_i32_0 = arith.constant 0 : i32
    return %arg0, %c0_i32 : i32, i32
  }
}

</mosaic_0001>

<llo_original>
// kernel: tpu_custom_call.1
$region0: #{tpu_custom_call.1}
  #allocation0 [shape = 'u32[]', space=smem, size = 0x4, offset = 0x4, fixed_abs, tag = 'smem constant byte address 0x4 - core index']
  #allocation1 [shape = 'u32[72,128]{1,0:T(1,128)}', space=vmem, size = 0x9000, scoped, tag = 'internal scratch']
  #allocation2 [shape = 'f32[1,256]{1,0:T(1,128)}', space=vmem, size = 0x400, scoped, tag = 'scratch operand']
  #allocation3 [shape = 'f32[1,256]{1,0:T(1,128)}', space=vmem, size = 0x400, scoped, tag = 'scratch operand']
  #allocation4 [shape = 'f32[1,256]{1,0:T(1,128)}', space=vmem, size = 0x400, scoped, tag = 'scratch operand']
  #allocation5 [shape = 'f32[1,1]{1,0:T(1,128)}', space=vmem, size = 0x200, scoped, tag = 'scratch operand']
  %s0 = inlined_call_operand.hbm [shape: f32[128,256], index: 0, kind: input, shape index: {}]
  %s1 = inlined_call_operand.hbm [shape: f32[1,1], index: 1, kind: output, shape index: {}]
  %s2 = sld [smem:[#allocation0]]
  $region26: #{tpu_custom_call.1} parent=0
    _
  %s4 = ssub.s32 1, %s2
  %s5 = scalar_select 0, %s4, %s2
  $region1: #{tpu_custom_call.1} parent=0
    #allocation6 [shape = 'u8[131072]{0}', space=vmem, size = 0x20000, scoped, tag = 'input window, operand 0, single buffered']
    #allocation7 [shape = 's32[1]{0}', space=sflag, size = 0x4, scoped, tag = 'scoped memory for tpu_custom_call.1']
    #allocation8 [shape = 's32[1]{0}', space=sflag, size = 0x4, scoped, tag = 'scoped memory for tpu_custom_call.1']
    #allocation9 [shape = 'u8[512]{0}', space=smem, size = 0x200, scoped, tag = 'output window, operand 0, single buffered']
    %6 = vsyncpa [#allocation7], 0
    %7 = vsyncpa [#allocation8], 0
    // Predicated region
    $region2: #{tpu_custom_call.1} parent=1 // pred_check
      _
    $region3: #{tpu_custom_call.1} parent=1 // pred_check_branch
      %9 = sbr.rel (0) target = $region5
    $region4: #{tpu_custom_call.1} parent=1 // pred_region
      %s10 = sadd.s32 0, 0
      %s11 = smul.u32 16, %s10
      %13 = vsyncadd [#allocation7], 0
      %s14 = smul.addr %s11, 2
      %s15 = smul.addr %s14, 8
      %s16 = scalar_lea.hbm %s0, %s15
      %s17 = sshll.u32 %s16, 4
      %s18 = int_to_ptr.hbm [resolvable:$true] %s17
      %s19 = sshll.u32 [#allocation6], 4
      %s20 = int_to_ptr.vmem [resolvable:$true] %s19
      %25 = dma.hbm_to_vmem [thread:$0]  %s18, 4096, %s20, [#allocation7], 256, 256, 16
    $region5: #{tpu_custom_call.1} parent=1 // pred_fallthru
      _
    // Predicated region
    $region6: #{tpu_custom_call.1} parent=1 // pred_check
      _
    $region7: #{tpu_custom_call.1} parent=1 // pred_check_branch
      %27 = sbr.rel (0) target = $region9
    $region8: #{tpu_custom_call.1} parent=1 // pred_region
      %29 = dma.done [#allocation7], 4096
    $region9: #{tpu_custom_call.1} parent=1 // pred_fallthru
      _
    %s30 = sadd.s32 0, 0
    %s31 = smul.u32 16, %s30
    %v32 = vld [vmem:[#allocation6] sm:$0xff]
    %v33 = vld [vmem:[#allocation6 + $0x8] sm:$0xff]
    %v34 = vld [vmem:[#allocation6 + $0x10] sm:$0xff]
    %v35 = vld [vmem:[#allocation6 + $0x18] sm:$0xff]
    %v36 = vld [vmem:[#allocation6 + $0x20] sm:$0xff]
    %v37 = vld [vmem:[#allocation6 + $0x28] sm:$0xff]
    %v38 = vld [vmem:[#allocation6 + $0x30] sm:$0xff]
    %v39 = vld [vmem:[#allocation6 + $0x38] sm:$0xff]
    %v40 = vld [vmem:[#allocation6 + $0x40] sm:$0xff]
    %v41 = vld [vmem:[#allocation6 + $0x48] sm:$0xff]
    %v42 = vld [vmem:[#allocation6 + $0x50] sm:$0xff]
    %v43 = vld [vmem:[#allocation6 + $0x58] sm:$0xff]
    %v44 = vld [vmem:[#allocation6 + $0x60] sm:$0xff]
    %v45 = vld [vmem:[#allocation6 + $0x68] sm:$0xff]
    %v46 = vld [vmem:[#allocation6 + $0x70] sm:$0xff]
    %v47 = vld [vmem:[#allocation6 + $0x78] sm:$0xff]
    %v48 = vld [vmem:[#allocation6 + $0x80] sm:$0xff]
    %v49 = vld [vmem:[#allocation6 + $0x88] sm:$0xff]
    %v50 = vld [vmem:[#allocation6 + $0x90] sm:$0xff]
    %v51 = vld [vmem:[#allocation6 + $0x98] sm:$0xff]
    %v52 = vld [vmem:[#allocation6 + $0xa0] sm:$0xff]
    %v53 = vld [vmem:[#allocation6 + $0xa8] sm:$0xff]
    %v54 = vld [vmem:[#allocation6 + $0xb0] sm:$0xff]
    %v55 = vld [vmem:[#allocation6 + $0xb8] sm:$0xff]
    %v56 = vld [vmem:[#allocation6 + $0xc0] sm:$0xff]
    %v57 = vld [vmem:[#allocation6 + $0xc8] sm:$0xff]
    %v58 = vld [vmem:[#allocation6 + $0xd0] sm:$0xff]
    %v59 = vld [vmem:[#allocation6 + $0xd8] sm:$0xff]
    %v60 = vld [vmem:[#allocation6 + $0xe0] sm:$0xff]
    %v61 = vld [vmem:[#allocation6 + $0xe8] sm:$0xff]
    %v62 = vld [vmem:[#allocation6 + $0xf0] sm:$0xff]
    %v63 = vld [vmem:[#allocation6 + $0xf8] sm:$0xff]
    %p64 = scmp.eq.s32.totalorder 0, 0
    // Predicated region
    $region10: #{tpu_custom_call.1} parent=1 // pred_check
      %p65 = pneg %p64
    $region11: #{tpu_custom_call.1} parent=1 // pred_check_branch
      %67 = sbr.rel (%p65) target = $region13
    $region12: #{tpu_custom_call.1} parent=1 // pred_region
      %v68 = vlaneseq
      %vm69 = vcmp.ge.s32.totalorder %v68, 0
      %vm70 = vcmp.lt.s32.totalorder %v68, 256
      %vm71 = vmand %vm69, %vm70
      %72 = vst.msk [vmem:[#allocation2] sm:$0x3] %vm71, 0.0
      %73 = vst.msk [vmem:[#allocation3] sm:$0x3] %vm71, 0.0
      %vm74 = vcmask 0
      %75 = vst.msk [vmem:[#allocation5] sm:$0x1] %vm74, 0.0
      %v78 = vrot.slane %v33, 7
      %vm79 = vcmask 1040384
      %v80 = vsel %vm79, %v32, %v78
      %82 = vst.msk [vmem:[#allocation4] sm:$0x3] %vm71, %v80
    $region13: #{tpu_custom_call.1} parent=1 // pred_fallthru
      _
    %vm115 = vcmask 1040384
    %v116 = vrot.slane %v32, 7
    %v117 = vrot.slane %v33, 7
    %v118 = vrot.slane %v34, 7
    %v119 = vsel %vm115, %v116, %v118
    %v120 = vrot.slane %v35, 7
    %v121 = vsel %vm115, %v117, %v120
    %v122 = vrot.slane %v36, 7
    %v123 = vsel %vm115, %v118, %v122
    %v124 = vrot.slane %v37, 7
    %v125 = vsel %vm115, %v120, %v124
    %v126 = vrot.slane %v38, 7
    %v127 = vsel %vm115, %v122, %v126
    %v128 = vrot.slane %v39, 7
    %v129 = vsel %vm115, %v124, %v128
    %v130 = vrot.slane %v40, 7
    %v131 = vsel %vm115, %v126, %v130
    %v132 = vrot.slane %v41, 7
    %v133 = vsel %vm115, %v128, %v132
    %v134 = vrot.slane %v42, 7
    %v135 = vsel %vm115, %v130, %v134
    %v136 = vrot.slane %v43, 7
    %v137 = vsel %vm115, %v132, %v136
    %v138 = vrot.slane %v44, 7
    %v139 = vsel %vm115, %v134, %v138
    %v140 = vrot.slane %v45, 7
    %v141 = vsel %vm115, %v136, %v140
    %v142 = vrot.slane %v46, 7
    %v143 = vsel %vm115, %v138, %v142
    %v144 = vrot.slane %v47, 7
    %v145 = vsel %vm115, %v140, %v144
    %v146 = vrot.slane %v48, 7
    %v147 = vsel %vm115, %v142, %v146
    %v148 = vrot.slane %v49, 7
    %v149 = vsel %vm115, %v144, %v148
    %v150 = vrot.slane %v50, 7
    %v151 = vsel %vm115, %v146, %v150
    %v152 = vrot.slane %v51, 7
    %v153 = vsel %vm115, %v148, %v152
    %v154 = vrot.slane %v52, 7
    %v155 = vsel %vm115, %v150, %v154
    %v156 = vrot.slane %v53, 7
    %v157 = vsel %vm115, %v152, %v156
    %v158 = vrot.slane %v54, 7
    %v159 = vsel %vm115, %v154, %v158
    %v160 = vrot.slane %v55, 7
    %v161 = vsel %vm115, %v156, %v160
    %v162 = vrot.slane %v56, 7
    %v163 = vsel %vm115, %v158, %v162
    %v164 = vrot.slane %v57, 7
    %v165 = vsel %vm115, %v160, %v164
    %v166 = vrot.slane %v58, 7
    %v167 = vsel %vm115, %v162, %v166
    %v168 = vrot.slane %v59, 7
    %v169 = vsel %vm115, %v164, %v168
    %v170 = vrot.slane %v60, 7
    %v171 = vsel %vm115, %v166, %v170
    %v172 = vrot.slane %v61, 7
    %v173 = vsel %vm115, %v168, %v172
    %v174 = vrot.slane %v62, 7
    %v175 = vsel %vm115, %v170, %v174
    %v176 = vrot.slane %v63, 7
    %v177 = vsel %vm115, %v172, %v176
    %v210 = vsub.f32 %v32, %v116
    %v211 = vsub.f32 %v33, %v117
    %v212 = vsub.f32 %v34, %v119
    %v213 = vsub.f32 %v35, %v121
    %v214 = vsub.f32 %v36, %v123
    %v215 = vsub.f32 %v37, %v125
    %v216 = vsub.f32 %v38, %v127
    %v217 = vsub.f32 %v39, %v129
    %v218 = vsub.f32 %v40, %v131
    %v219 = vsub.f32 %v41, %v133
    %v220 = vsub.f32 %v42, %v135
    %v221 = vsub.f32 %v43, %v137
    %v222 = vsub.f32 %v44, %v139
    %v223 = vsub.f32 %v45, %v141
    %v224 = vsub.f32 %v46, %v143
    %v225 = vsub.f32 %v47, %v145
    %v226 = vsub.f32 %v48, %v147
    %v227 = vsub.f32 %v49, %v149
    %v228 = vsub.f32 %v50, %v151
    %v229 = vsub.f32 %v51, %v153
    %v230 = vsub.f32 %v52, %v155
    %v231 = vsub.f32 %v53, %v157
    %v232 = vsub.f32 %v54, %v159
    %v233 = vsub.f32 %v55, %v161
    %v234 = vsub.f32 %v56, %v163
    %v235 = vsub.f32 %v57, %v165
    %v236 = vsub.f32 %v58, %v167
    %v237 = vsub.f32 %v59, %v169
    %v238 = vsub.f32 %v60, %v171
    %v239 = vsub.f32 %v61, %v173
    %v240 = vsub.f32 %v62, %v175
    %v241 = vsub.f32 %v63, %v177
    %v242 = vand.u32 2147483647, %v210
    %v243 = vand.u32 2147483647, %v211
    %v244 = vand.u32 2147483647, %v212
    %v245 = vand.u32 2147483647, %v213
    %v246 = vand.u32 2147483647, %v214
    %v247 = vand.u32 2147483647, %v215
    %v248 = vand.u32 2147483647, %v216
    %v249 = vand.u32 2147483647, %v217
    %v250 = vand.u32 2147483647, %v218
    %v251 = vand.u32 2147483647, %v219
    %v252 = vand.u32 2147483647, %v220
    %v253 = vand.u32 2147483647, %v221
    %v254 = vand.u32 2147483647, %v222
    %v255 = vand.u32 2147483647, %v223
    %v256 = vand.u32 2147483647, %v224
    %v257 = vand.u32 2147483647, %v225
    %v258 = vand.u32 2147483647, %v226
    %v259 = vand.u32 2147483647, %v227
    %v260 = vand.u32 2147483647, %v228
    %v261 = vand.u32 2147483647, %v229
    %v262 = vand.u32 2147483647, %v230
    %v263 = vand.u32 2147483647, %v231
    %v264 = vand.u32 2147483647, %v232
    %v265 = vand.u32 2147483647, %v233
    %v266 = vand.u32 2147483647, %v234
    %v267 = vand.u32 2147483647, %v235
    %v268 = vand.u32 2147483647, %v236
    %v269 = vand.u32 2147483647, %v237
    %v270 = vand.u32 2147483647, %v238
    %v271 = vand.u32 2147483647, %v239
    %v272 = vand.u32 2147483647, %v240
    %v273 = vand.u32 2147483647, %v241
    %v274 = vld [vmem:[#allocation4] sm:$0x3]
    %v276 = vperm.slane %v274, 0
    %v277 = vperm.slane %v274, 1
    %v280 = vsub.f32 %v32, %v276
    %v281 = vsub.f32 %v33, %v277
    %v282 = vand.u32 2147483647, %v280
    %v283 = vand.u32 2147483647, %v281
    %284 = vrot.lane.b32.xlu0 %v32, 1
    %v285 = vpop.permute.xlu0 %284
    %286 = vrot.lane.b32.xlu0 %v34, 1
    %v287 = vpop.permute.xlu0 %286
    %288 = vrot.lane.b32.xlu0 %v36, 1
    %v289 = vpop.permute.xlu0 %288
    %290 = vrot.lane.b32.xlu0 %v38, 1
    %v291 = vpop.permute.xlu0 %290
    %292 = vrot.lane.b32.xlu0 %v40, 1
    %v293 = vpop.permute.xlu0 %292
    %294 = vrot.lane.b32.xlu0 %v42, 1
    %v295 = vpop.permute.xlu0 %294
    %296 = vrot.lane.b32.xlu0 %v44, 1
    %v297 = vpop.permute.xlu0 %296
    %298 = vrot.lane.b32.xlu0 %v46, 1
    %v299 = vpop.permute.xlu0 %298
    %300 = vrot.lane.b32.xlu0 %v48, 1
    %v301 = vpop.permute.xlu0 %300
    %302 = vrot.lane.b32.xlu0 %v50, 1
    %v303 = vpop.permute.xlu0 %302
    %304 = vrot.lane.b32.xlu0 %v52, 1
    %v305 = vpop.permute.xlu0 %304
    %306 = vrot.lane.b32.xlu0 %v54, 1
    %v307 = vpop.permute.xlu0 %306
    %308 = vrot.lane.b32.xlu0 %v56, 1
    %v309 = vpop.permute.xlu0 %308
    %310 = vrot.lane.b32.xlu0 %v58, 1
    %v311 = vpop.permute.xlu0 %310
    %312 = vrot.lane.b32.xlu0 %v60, 1
    %v313 = vpop.permute.xlu0 %312
    %314 = vrot.lane.b32.xlu0 %v62, 1
    %v315 = vpop.permute.xlu0 %314
    %316 = vrot.lane.b32.xlu0 %v33, 1
    %v317 = vpop.permute.xlu0 %316
    %318 = vrot.lane.b32.xlu0 %v35, 1
    %v319 = vpop.permute.xlu0 %318
    %320 = vrot.lane.b32.xlu0 %v37, 1
    %v321 = vpop.permute.xlu0 %320
    %322 = vrot.lane.b32.xlu0 %v39, 1
    %v323 = vpop.permute.xlu0 %322
    %324 = vrot.lane.b32.xlu0 %v41, 1
    %v325 = vpop.permute.xlu0 %324
    %326 = vrot.lane.b32.xlu0 %v43, 1
    %v327 = vpop.permute.xlu0 %326
    %328 = vrot.lane.b32.xlu0 %v45, 1
    %v329 = vpop.permute.xlu0 %328
    %330 = vrot.lane.b32.xlu0 %v47, 1
    %v331 = vpop.permute.xlu0 %330
    %332 = vrot.lane.b32.xlu0 %v49, 1
    %v333 = vpop.permute.xlu0 %332
    %334 = vrot.lane.b32.xlu0 %v51, 1
    %v335 = vpop.permute.xlu0 %334
    %336 = vrot.lane.b32.xlu0 %v53, 1
    %v337 = vpop.permute.xlu0 %336
    %338 = vrot.lane.b32.xlu0 %v55, 1
    %v339 = vpop.permute.xlu0 %338
    %340 = vrot.lane.b32.xlu0 %v57, 1
    %v341 = vpop.permute.xlu0 %340
    %342 = vrot.lane.b32.xlu0 %v59, 1
    %v343 = vpop.permute.xlu0 %342
    %344 = vrot.lane.b32.xlu0 %v61, 1
    %v345 = vpop.permute.xlu0 %344
    %346 = vrot.lane.b32.xlu0 %v63, 1
    %v347 = vpop.permute.xlu0 %346
    %v348 = vlaneseq
    %v349 = vand.u32 %v348, 127
    %vm350 = vcmp.lt.s32.totalorder %v349, 1
    %v351 = vsel %vm350, %v285, %v317
    %v352 = vsel %vm350, %v287, %v319
    %v353 = vsel %vm350, %v289, %v321
    %v354 = vsel %vm350, %v291, %v323
    %v355 = vsel %vm350, %v293, %v325
    %v356 = vsel %vm350, %v295, %v327
    %v357 = vsel %vm350, %v297, %v329
    %v358 = vsel %vm350, %v299, %v331
    %v359 = vsel %vm350, %v301, %v333
    %v360 = vsel %vm350, %v303, %v335
    %v361 = vsel %vm350, %v305, %v337
    %v362 = vsel %vm350, %v307, %v339
    %v363 = vsel %vm350, %v309, %v341
    %v364 = vsel %vm350, %v311, %v343
    %v365 = vsel %vm350, %v313, %v345
    %v366 = vsel %vm350, %v315, %v347
    %v367 = vsel %vm350, %v317, %v285
    %v368 = vsel %vm350, %v319, %v287
    %v369 = vsel %vm350, %v321, %v289
    %v370 = vsel %vm350, %v323, %v291
    %v371 = vsel %vm350, %v325, %v293
    %v372 = vsel %vm350, %v327, %v295
    %v373 = vsel %vm350, %v329, %v297
    %v374 = vsel %vm350, %v331, %v299
    %v375 = vsel %vm350, %v333, %v301
    %v376 = vsel %vm350, %v335, %v303
    %v377 = vsel %vm350, %v337, %v305
    %v378 = vsel %vm350, %v339, %v307
    %v379 = vsel %vm350, %v341, %v309
    %v380 = vsel %vm350, %v343, %v311
    %v381 = vsel %vm350, %v345, %v313
    %v382 = vsel %vm350, %v347, %v315
    %v383 = vsub.f32 %v367, %v32
    %v384 = vsub.f32 %v351, %v33
    %v385 = vsub.f32 %v368, %v34
    %v386 = vsub.f32 %v352, %v35
    %v387 = vsub.f32 %v369, %v36
    %v388 = vsub.f32 %v353, %v37
    %v389 = vsub.f32 %v370, %v38
    %v390 = vsub.f32 %v354, %v39
    %v391 = vsub.f32 %v371, %v40
    %v392 = vsub.f32 %v355, %v41
    %v393 = vsub.f32 %v372, %v42
    %v394 = vsub.f32 %v356, %v43
    %v395 = vsub.f32 %v373, %v44
    %v396 = vsub.f32 %v357, %v45
    %v397 = vsub.f32 %v374, %v46
    %v398 = vsub.f32 %v358, %v47
    %v399 = vsub.f32 %v375, %v48
    %v400 = vsub.f32 %v359, %v49
    %v401 = vsub.f32 %v376, %v50
    %v402 = vsub.f32 %v360, %v51
    %v403 = vsub.f32 %v377, %v52
    %v404 = vsub.f32 %v361, %v53
    %v405 = vsub.f32 %v378, %v54
    %v406 = vsub.f32 %v362, %v55
    %v407 = vsub.f32 %v379, %v56
    %v408 = vsub.f32 %v363, %v57
    %v409 = vsub.f32 %v380, %v58
    %v410 = vsub.f32 %v364, %v59
    %v411 = vsub.f32 %v381, %v60
    %v412 = vsub.f32 %v365, %v61
    %v413 = vsub.f32 %v382, %v62
    %v414 = vsub.f32 %v366, %v63
    %v415 = vand.u32 2147483647, %v383
    %v416 = vand.u32 2147483647, %v384
    %v417 = vand.u32 2147483647, %v385
    %v418 = vand.u32 2147483647, %v386
    %v419 = vand.u32 2147483647, %v387
    %v420 = vand.u32 2147483647, %v388
    %v421 = vand.u32 2147483647, %v389
    %v422 = vand.u32 2147483647, %v390
    %v423 = vand.u32 2147483647, %v391
    %v424 = vand.u32 2147483647, %v392
    %v425 = vand.u32 2147483647, %v393
    %v426 = vand.u32 2147483647, %v394
    %v427 = vand.u32 2147483647, %v395
    %v428 = vand.u32 2147483647, %v396
    %v429 = vand.u32 2147483647, %v397
    %v430 = vand.u32 2147483647, %v398
    %v431 = vand.u32 2147483647, %v399
    %v432 = vand.u32 2147483647, %v400
    %v433 = vand.u32 2147483647, %v401
    %v434 = vand.u32 2147483647, %v402
    %v435 = vand.u32 2147483647, %v403
    %v436 = vand.u32 2147483647, %v404
    %v437 = vand.u32 2147483647, %v405
    %v438 = vand.u32 2147483647, %v406
    %v439 = vand.u32 2147483647, %v407
    %v440 = vand.u32 2147483647, %v408
    %v441 = vand.u32 2147483647, %v409
    %v442 = vand.u32 2147483647, %v410
    %v443 = vand.u32 2147483647, %v411
    %v444 = vand.u32 2147483647, %v412
    %v445 = vand.u32 2147483647, %v413
    %v446 = vand.u32 2147483647, %v414
    %447 = vrot.lane.b32.xlu0 %v33, 1
    %v448 = vpop.permute.xlu0 %447
    %449 = vrot.lane.b32.xlu0 %v35, 1
    %v450 = vpop.permute.xlu0 %449
    %451 = vrot.lane.b32.xlu0 %v37, 1
    %v452 = vpop.permute.xlu0 %451
    %453 = vrot.lane.b32.xlu0 %v39, 1
    %v454 = vpop.permute.xlu0 %453
    %455 = vrot.lane.b32.xlu0 %v41, 1
    %v456 = vpop.permute.xlu0 %455
    %457 = vrot.lane.b32.xlu0 %v43, 1
    %v458 = vpop.permute.xlu0 %457
    %459 = vrot.lane.b32.xlu0 %v45, 1
    %v460 = vpop.permute.xlu0 %459
    %461 = vrot.lane.b32.xlu0 %v47, 1
    %v462 = vpop.permute.xlu0 %461
    %463 = vrot.lane.b32.xlu0 %v49, 1
    %v464 = vpop.permute.xlu0 %463
    %465 = vrot.lane.b32.xlu0 %v51, 1
    %v466 = vpop.permute.xlu0 %465
    %467 = vrot.lane.b32.xlu0 %v53, 1
    %v468 = vpop.permute.xlu0 %467
    %469 = vrot.lane.b32.xlu0 %v55, 1
    %v470 = vpop.permute.xlu0 %469
    %471 = vrot.lane.b32.xlu0 %v57, 1
    %v472 = vpop.permute.xlu0 %471
    %473 = vrot.lane.b32.xlu0 %v59, 1
    %v474 = vpop.permute.xlu0 %473
    %475 = vrot.lane.b32.xlu0 %v61, 1
    %v476 = vpop.permute.xlu0 %475
    %477 = vrot.lane.b32.xlu0 %v63, 1
    %v478 = vpop.permute.xlu0 %477
    %v495 = vsub.f32 %v32, %v448
    %v496 = vsub.f32 %v34, %v450
    %v497 = vsub.f32 %v36, %v452
    %v498 = vsub.f32 %v38, %v454
    %v499 = vsub.f32 %v40, %v456
    %v500 = vsub.f32 %v42, %v458
    %v501 = vsub.f32 %v44, %v460
    %v502 = vsub.f32 %v46, %v462
    %v503 = vsub.f32 %v48, %v464
    %v504 = vsub.f32 %v50, %v466
    %v505 = vsub.f32 %v52, %v468
    %v506 = vsub.f32 %v54, %v470
    %v507 = vsub.f32 %v56, %v472
    %v508 = vsub.f32 %v58, %v474
    %v509 = vsub.f32 %v60, %v476
    %v510 = vsub.f32 %v62, %v478
    %v511 = vand.u32 2147483647, %v495
    %v512 = vand.u32 2147483647, %v496
    %v513 = vand.u32 2147483647, %v497
    %v514 = vand.u32 2147483647, %v498
    %v515 = vand.u32 2147483647, %v499
    %v516 = vand.u32 2147483647, %v500
    %v517 = vand.u32 2147483647, %v501
    %v518 = vand.u32 2147483647, %v502
    %v519 = vand.u32 2147483647, %v503
    %v520 = vand.u32 2147483647, %v504
    %v521 = vand.u32 2147483647, %v505
    %v522 = vand.u32 2147483647, %v506
    %v523 = vand.u32 2147483647, %v507
    %v524 = vand.u32 2147483647, %v508
    %v525 = vand.u32 2147483647, %v509
    %v526 = vand.u32 2147483647, %v510
    %v527 = vld [vmem:[#allocation2] sm:$0x3]
    %vm560 = vcmask 1046528
    %v561 = vrot.slane %v242, 1
    %v562 = vrot.slane %v244, 1
    %v563 = vsel %vm560, %v561, %v562
    %v564 = vrot.slane %v243, 1
    %v565 = vrot.slane %v245, 1
    %v566 = vsel %vm560, %v564, %v565
    %v567 = vrot.slane %v246, 1
    %v568 = vsel %vm560, %v562, %v567
    %v569 = vrot.slane %v247, 1
    %v570 = vsel %vm560, %v565, %v569
    %v571 = vrot.slane %v248, 1
    %v572 = vsel %vm560, %v567, %v571
    %v573 = vrot.slane %v249, 1
    %v574 = vsel %vm560, %v569, %v573
    %v575 = vrot.slane %v250, 1
    %v576 = vsel %vm560, %v571, %v575
    %v577 = vrot.slane %v251, 1
    %v578 = vsel %vm560, %v573, %v577
    %v579 = vrot.slane %v252, 1
    %v580 = vsel %vm560, %v575, %v579
    %v581 = vrot.slane %v253, 1
    %v582 = vsel %vm560, %v577, %v581
    %v583 = vrot.slane %v254, 1
    %v584 = vsel %vm560, %v579, %v583
    %v585 = vrot.slane %v255, 1
    %v586 = vsel %vm560, %v581, %v585
    %v587 = vrot.slane %v256, 1
    %v588 = vsel %vm560, %v583, %v587
    %v589 = vrot.slane %v257, 1
    %v590 = vsel %vm560, %v585, %v589
    %v591 = vrot.slane %v258, 1
    %v592 = vsel %vm560, %v587, %v591
    %v593 = vrot.slane %v259, 1
    %v594 = vsel %vm560, %v589, %v593
    %v595 = vrot.slane %v260, 1
    %v596 = vsel %vm560, %v591, %v595
    %v597 = vrot.slane %v261, 1
    %v598 = vsel %vm560, %v593, %v597
    %v599 = vrot.slane %v262, 1
    %v600 = vsel %vm560, %v595, %v599
    %v601 = vrot.slane %v263, 1
    %v602 = vsel %vm560, %v597, %v601
    %v603 = vrot.slane %v264, 1
    %v604 = vsel %vm560, %v599, %v603
    %v605 = vrot.slane %v265, 1
    %v606 = vsel %vm560, %v601, %v605
    %v607 = vrot.slane %v266, 1
    %v608 = vsel %vm560, %v603, %v607
    %v609 = vrot.slane %v267, 1
    %v610 = vsel %vm560, %v605, %v609
    %v611 = vrot.slane %v268, 1
    %v612 = vsel %vm560, %v607, %v611
    %v613 = vrot.slane %v269, 1
    %v614 = vsel %vm560, %v609, %v613
    %v615 = vrot.slane %v270, 1
    %v616 = vsel %vm560, %v611, %v615
    %v617 = vrot.slane %v271, 1
    %v618 = vsel %vm560, %v613, %v617
    %v619 = vrot.slane %v272, 1
    %v620 = vsel %vm560, %v615, %v619
    %v621 = vrot.slane %v273, 1
    %v622 = vsel %vm560, %v617, %v621
    %v655 = vadd.f32 %v563, %v568
    %v656 = vadd.f32 %v655, %v572
    %v657 = vadd.f32 %v656, %v576
    %v658 = vadd.f32 %v657, %v580
    %v659 = vadd.f32 %v658, %v584
    %v660 = vadd.f32 %v659, %v588
    %v661 = vadd.f32 %v660, %v592
    %v662 = vadd.f32 %v661, %v596
    %v663 = vadd.f32 %v662, %v600
    %v664 = vadd.f32 %v663, %v604
    %v665 = vadd.f32 %v664, %v608
    %v666 = vadd.f32 %v665, %v612
    %v667 = vadd.f32 %v666, %v616
    %v668 = vadd.f32 %v667, %v620
    %v669 = vsel %vm560, %v619, 0.0
    %v670 = vadd.f32 %v668, %v669
    %v671 = vrot.slane %v670, 4
    %v672 = vadd.f32 %v670, %v671
    %v673 = vrot.slane %v672, 2
    %v674 = vadd.f32 %v672, %v673
    %v675 = vrot.slane %v674, 1
    %v676 = vadd.f32 %v674, %v675
    %v677 = vadd.f32 %v566, %v570
    %v678 = vadd.f32 %v677, %v574
    %v679 = vadd.f32 %v678, %v578
    %v680 = vadd.f32 %v679, %v582
    %v681 = vadd.f32 %v680, %v586
    %v682 = vadd.f32 %v681, %v590
    %v683 = vadd.f32 %v682, %v594
    %v684 = vadd.f32 %v683, %v598
    %v685 = vadd.f32 %v684, %v602
    %v686 = vadd.f32 %v685, %v606
    %v687 = vadd.f32 %v686, %v610
    %v688 = vadd.f32 %v687, %v614
    %v689 = vadd.f32 %v688, %v618
    %v690 = vadd.f32 %v689, %v622
    %v691 = vsel %vm560, %v621, 0.0
    %v692 = vadd.f32 %v690, %v691
    %v693 = vrot.slane %v692, 4
    %v694 = vadd.f32 %v692, %v693
    %v695 = vrot.slane %v694, 2
    %v696 = vadd.f32 %v694, %v695
    %v697 = vrot.slane %v696, 1
    %v698 = vadd.f32 %v696, %v697
    %v699 = vadd.f32 %v676, %v282
    %v700 = vadd.f32 %v698, %v283
    %v703 = vrot.slane %v700, 7
    %v704 = vsel %vm115, %v699, %v703
    %v706 = vadd.f32 %v527, %v704
    %v707 = vlaneseq
    %vm708 = vcmp.ge.s32.totalorder %v707, 0
    %vm709 = vcmp.lt.s32.totalorder %v707, 256
    %vm710 = vmand %vm708, %vm709
    %711 = vst.msk [vmem:[#allocation2] sm:$0x3] %vm710, %v706
    %v712 = vld [vmem:[#allocation3] sm:$0x3]
    %v713 = vadd.f32 %v415, %v417
    %v714 = vadd.f32 %v713, %v419
    %v715 = vadd.f32 %v714, %v421
    %v716 = vadd.f32 %v715, %v423
    %v717 = vadd.f32 %v716, %v425
    %v718 = vadd.f32 %v717, %v427
    %v719 = vadd.f32 %v718, %v429
    %v720 = vadd.f32 %v719, %v431
    %v721 = vadd.f32 %v720, %v433
    %v722 = vadd.f32 %v721, %v435
    %v723 = vadd.f32 %v722, %v437
    %v724 = vadd.f32 %v723, %v439
    %v725 = vadd.f32 %v724, %v441
    %v726 = vadd.f32 %v725, %v443
    %v727 = vadd.f32 %v726, %v445
    %v728 = vrot.slane %v727, 4
    %v729 = vadd.f32 %v727, %v728
    %v730 = vrot.slane %v729, 2
    %v731 = vadd.f32 %v729, %v730
    %v732 = vrot.slane %v731, 1
    %v733 = vadd.f32 %v731, %v732
    %v734 = vadd.f32 %v416, %v418
    %v735 = vadd.f32 %v734, %v420
    %v736 = vadd.f32 %v735, %v422
    %v737 = vadd.f32 %v736, %v424
    %v738 = vadd.f32 %v737, %v426
    %v739 = vadd.f32 %v738, %v428
    %v740 = vadd.f32 %v739, %v430
    %v741 = vadd.f32 %v740, %v432
    %v742 = vadd.f32 %v741, %v434
    %v743 = vadd.f32 %v742, %v436
    %v744 = vadd.f32 %v743, %v438
    %v745 = vadd.f32 %v744, %v440
    %v746 = vadd.f32 %v745, %v442
    %v747 = vadd.f32 %v746, %v444
    %v748 = vadd.f32 %v747, %v446
    %v749 = vrot.slane %v748, 4
    %v750 = vadd.f32 %v748, %v749
    %v751 = vrot.slane %v750, 2
    %v752 = vadd.f32 %v750, %v751
    %v753 = vrot.slane %v752, 1
    %v754 = vadd.f32 %v752, %v753
    %v757 = vrot.slane %v754, 7
    %v758 = vsel %vm115, %v733, %v757
    %v760 = vadd.f32 %v712, %v758
    %761 = vst.msk [vmem:[#allocation3] sm:$0x3] %vm710, %v760
    %v762 = vld [vmem:[#allocation5] sm:$0x1]
    %vm763 = vcmask 7168
    %v764 = vsel %vm763, %v511, 0.0
    %v765 = vsel %vm763, %v512, 0.0
    %v766 = vadd.f32 %v764, %v765
    %v767 = vsel %vm763, %v513, 0.0
    %v768 = vadd.f32 %v766, %v767
    %v769 = vsel %vm763, %v514, 0.0
    %v770 = vadd.f32 %v768, %v769
    %v771 = vsel %vm763, %v515, 0.0
    %v772 = vadd.f32 %v770, %v771
    %v773 = vsel %vm763, %v516, 0.0
    %v774 = vadd.f32 %v772, %v773
    %v775 = vsel %vm763, %v517, 0.0
    %v776 = vadd.f32 %v774, %v775
    %v777 = vsel %vm763, %v518, 0.0
    %v778 = vadd.f32 %v776, %v777
    %v779 = vsel %vm763, %v519, 0.0
    %v780 = vadd.f32 %v778, %v779
    %v781 = vsel %vm763, %v520, 0.0
    %v782 = vadd.f32 %v780, %v781
    %v783 = vsel %vm763, %v521, 0.0
    %v784 = vadd.f32 %v782, %v783
    %v785 = vsel %vm763, %v522, 0.0
    %v786 = vadd.f32 %v784, %v785
    %v787 = vsel %vm763, %v523, 0.0
    %v788 = vadd.f32 %v786, %v787
    %v789 = vsel %vm763, %v524, 0.0
    %v790 = vadd.f32 %v788, %v789
    %v791 = vsel %vm763, %v525, 0.0
    %v792 = vadd.f32 %v790, %v791
    %v793 = vsel %vm763, %v526, 0.0
    %v794 = vadd.f32 %v792, %v793
    %v795 = vrot.slane %v794, 4
    %v796 = vadd.f32 %v794, %v795
    %v797 = vrot.slane %v796, 2
    %v798 = vadd.f32 %v796, %v797
    %v799 = vrot.slane %v798, 1
    %v800 = vadd.f32 %v798, %v799
    %v801 = vadd.f32 %v762, %v800
    %vm802 = vcmask 0
    %803 = vst.msk [vmem:[#allocation5] sm:$0x1] %vm802, %v801
    %804 = vst [vmem:[#allocation1] sm:$0xff] %v62
    %805 = vst [vmem:[#allocation1 + $0x9] sm:$0xff] %v63
    %s806 = scalar_lea.vmem [#allocation1], 7
    %v807 = vld [vmem:[%s806] ss:$9 sm:$0xff]
    %809 = vst.msk [vmem:[#allocation4] sm:$0x3] %vm710, %v807
    // Predicated region
    $region14: #{tpu_custom_call.1} parent=1 // pred_check
      %p810 = pneg %p64
    $region15: #{tpu_custom_call.1} parent=1 // pred_check_branch
      %812 = sbr.rel (%p810) target = $region17
    $region16: #{tpu_custom_call.1} parent=1 // pred_region
      %v813 = vld [vmem:[#allocation2] sm:$0x3]
      %v815 = vperm.slane %v813, 0
      %v816 = vperm.slane %v813, 1
      %v819 = vsel %vm115, %v815, 0.0
      %v820 = vsel %vm115, %v816, 0.0
      %v821 = vadd.f32 %v819, %v820
      %822 = vadd.xlane.f32.xlu0 %v821
      %v823 = vpop.xlane.xlu0 %822
      %v824 = vrot.slane %v823, 4
      %v825 = vadd.f32 %v823, %v824
      %v826 = vrot.slane %v825, 2
      %v827 = vadd.f32 %v825, %v826
      %v828 = vrot.slane %v827, 1
      %v829 = vadd.f32 %v827, %v828
      %s830 = vtos %v829
      %v831 = vld [vmem:[#allocation3] sm:$0x3]
      %v833 = vperm.slane %v831, 0
      %v834 = vperm.slane %v831, 1
      %v837 = vsel %vm115, %v833, 0.0
      %v838 = vsel %vm115, %v834, 0.0
      %v839 = vadd.f32 %v837, %v838
      %840 = vadd.xlane.f32.xlu0 %v839
      %v841 = vpop.xlane.xlu0 %840
      %v842 = vrot.slane %v841, 4
      %v843 = vadd.f32 %v841, %v842
      %v844 = vrot.slane %v843, 2
      %v845 = vadd.f32 %v843, %v844
      %v846 = vrot.slane %v845, 1
      %v847 = vadd.f32 %v845, %v846
      %s848 = vtos %v847
      %s849 = sadd.f32 %s830, %s848
      %v850 = vld [vmem:[#allocation5] sm:$0x1]
      %s851 = vtos %v850
      %s852 = ssub.f32 %s849, %s851
      %s853 = scalar_lea.smem [#allocation9], 0
      %854 = sst [smem:[%s853]] %s852
    $region17: #{tpu_custom_call.1} parent=1 // pred_fallthru
      _
    // Predicated region
    $region18: #{tpu_custom_call.1} parent=1 // pred_check
      _
    $region19: #{tpu_custom_call.1} parent=1 // pred_check_branch
      %856 = sbr.rel (0) target = $region21
    $region20: #{tpu_custom_call.1} parent=1 // pred_region
      %858 = vsyncadd [#allocation8], 0
      %s860 = sshll.u32 %s1, 4
      %s861 = int_to_ptr.hbm [resolvable:$true] %s860
      %863 = dma.smem_to_hbm [#allocation9], 16, %s861, [#allocation8]
    $region21: #{tpu_custom_call.1} parent=1 // pred_fallthru
      _
    // Predicated region
    $region22: #{tpu_custom_call.1} parent=1 // pred_check
      _
    $region23: #{tpu_custom_call.1} parent=1 // pred_check_branch
      %865 = sbr.rel (0) target = $region25
    $region24: #{tpu_custom_call.1} parent=1 // pred_region
      %867 = dma.done [#allocation8], 16
    $region25: #{tpu_custom_call.1} parent=1 // pred_fallthru
      _
    %868 = sfence
    %869 = vsyncpa [#allocation7], 1
    %870 = vsyncpa [#allocation8], 1

</llo_original>
